<compile_context>
chip_gen: v5e
topology: v5e:2x2
jax: 0.10.0
libtpu: 0.0.40
codegen_flags: <defaults>
</compile_context>

<pallas_src>
import jax
import jax.numpy as jnp
import numpy as np
from jax.experimental import pallas as pl
from jax.experimental.pallas import tpu as pltpu

DEGREE = 3  # KANblock always builds LucasKAN(in, in, 3)


def _make_fused_kernel(use_spatial_fc: bool, norm_mode: str, eps: float):
    """Fused ApplyKANs: all layers for one batch element, tile layout (seq, dim)."""

    def kernel(x_ref, w_ref, bias_ref, alpha_ref, beta_ref, out_ref):
        layer = pl.program_id(1)

        # Layer 0: seed the VMEM-resident accumulator (the output block, which the
        # out_spec keeps mapped to the same block for every layer step).
        @pl.when(layer == 0)
        def _():
            out_ref[...] = x_ref[...]

        cur = out_ref[...].astype(jnp.float32)           # (S, D): lane axis = dim
        t = jnp.tanh(cur)                                # L1
        l2 = t * t + 2.0                                 # L2 = t*L1 + L0  (L0 = 2)
        l3 = t * l2 + t                                  # L3 = t*L2 + L1

        bias = bias_ref[...]                             # prefolded L0 contribution
        if use_spatial_fc:
            # KAN acts along the channel (lane) axis D: y[s, o] = sum_i L[s, i] W[i, o]
            y = jnp.dot(t, w_ref[0], preferred_element_type=jnp.float32)
            y = y + jnp.dot(l2, w_ref[1], preferred_element_type=jnp.float32)
            y = y + jnp.dot(l3, w_ref[2], preferred_element_type=jnp.float32)
        else:
            # KAN acts along the seq (sublane) axis S: y[o, d] = sum_i Wt[o, i] L[i, d]
            y = jnp.dot(w_ref[0], t, preferred_element_type=jnp.float32)
            y = y + jnp.dot(w_ref[1], l2, preferred_element_type=jnp.float32)
            y = y + jnp.dot(w_ref[2], l3, preferred_element_type=jnp.float32)
        y = y + bias

        if norm_mode == "spatial":        # LN(180): normalize over channel axis (lanes)
            mean = jnp.mean(y, axis=1, keepdims=True)
            var = jnp.mean((y - mean) ** 2, axis=1, keepdims=True)
            y = (y - mean) * jax.lax.rsqrt(var + eps)
            y = y * alpha_ref[...] + beta_ref[...]       # alpha/beta: (1, D)
        elif norm_mode == "temporal":     # LN_v2(seq): normalize over seq axis (sublanes)
            mean = jnp.mean(y, axis=0, keepdims=True)
            var = jnp.mean((y - mean) ** 2, axis=0, keepdims=True)
            y = (y - mean) * jax.lax.rsqrt(var + eps)
            y = y * alpha_ref[...] + beta_ref[...]       # alpha/beta: (S, 1)
        elif norm_mode == "all":          # nn.LayerNorm([dim, seq]): whole tile
            mean = jnp.mean(y, keepdims=True)
            var = jnp.mean((y - mean) ** 2, keepdims=True)
            y = (y - mean) * jax.lax.rsqrt(var + eps)
            y = y * alpha_ref[...] + beta_ref[...]       # alpha/beta: (S, D)
        # norm_mode == "none": nn.Identity()

        out_ref[...] = (cur + y).astype(out_ref.dtype)

    return kernel


def apply_kans(x, w, bias, alpha, beta, *, use_spatial_fc, norm_mode, eps=1e-5):
    """ApplyKANs.forward: all KANblocks fused into a single pallas_call.

    x:     (B, dim, seq) in the PyTorch axis order.
    w:     (L, 3, in, in) per-degree KAN weights (degree-0 folded into `bias`).
    bias / alpha / beta: (L, r, c) with (r, c) broadcastable against the (seq, dim) tile.
    """
    B, D, S = x.shape
    L = w.shape[0]
    x_t = jnp.transpose(x, (0, 2, 1))                    # (B, S, D): lane axis = dim
    kernel = _make_fused_kernel(use_spatial_fc, norm_mode, eps)

    out_t = pl.pallas_call(
        kernel,
        out_shape=jax.ShapeDtypeStruct((B, S, D), x.dtype),
        grid=(B, L),
        in_specs=[
            # Activation: one batch element per grid block; index constant across
            # layers so it is only DMA'd when b changes.
            pl.BlockSpec((None, S, D), lambda b, l: (b, 0, 0)),
            # Per-layer parameters stream in (double-buffered by the pipeline,
            # overlapping the next layer's weight DMA with this layer's compute).
            pl.BlockSpec((None,) + tuple(w.shape[1:]), lambda b, l: (l, 0, 0, 0)),
            pl.BlockSpec((None,) + tuple(bias.shape[1:]), lambda b, l: (l, 0, 0)),
            pl.BlockSpec((None,) + tuple(alpha.shape[1:]), lambda b, l: (l, 0, 0)),
            pl.BlockSpec((None,) + tuple(beta.shape[1:]), lambda b, l: (l, 0, 0)),
        ],
        # Same block for every layer step -> activation stays resident in VMEM
        # across the whole layer stack; written back to HBM once per batch block.
        out_specs=pl.BlockSpec((None, S, D), lambda b, l: (b, 0, 0)),
        compiler_params=pltpu.CompilerParams(
            dimension_semantics=("parallel", "arbitrary")),
    )(x_t, w, bias, alpha, beta)

    return jnp.transpose(out_t, (0, 2, 1))


def init_params(key, dim, seq, num_layers, use_spatial_fc, use_norm, layernorm_axis):
    """Parameters mirroring the PyTorch __init__, pre-folded for the fused kernel."""
    norm_mode = layernorm_axis if use_norm else "none"
    in_dim = dim if use_spatial_fc else seq              # LucasKAN(in_dim, in_dim, 3)
    coeffs_l, w_l, b_l, a_l, be_l = [], [], [], [], []
    for _ in range(num_layers):
        key, sub = jax.random.split(key)
        std = 1.0 / (in_dim * (DEGREE + 1))
        coeffs = jax.random.normal(sub, (in_dim, in_dim, DEGREE + 1), jnp.float32) * std
        coeffs_l.append(coeffs)

        # Degree-0 Lucas poly is the constant 2 -> fold into a per-output-channel bias
        # (derived from the same coeff slice the kernel would otherwise contract).
        bias_vec = 2.0 * jnp.sum(coeffs[:, :, 0], axis=0)            # (in_dim,)
        if use_spatial_fc:
            # y[s, o] = sum_i L_k[s, i] * C[i, o, k]
            w = jnp.stack([coeffs[:, :, k] for k in (1, 2, 3)])      # (3, D, D)
            bias = bias_vec.reshape(1, in_dim)                       # broadcast over seq
        else:
            # y[o, d] = sum_i C[i, o, k] * L_k[i, d]   (weights pre-transposed)
            w = jnp.stack([coeffs[:, :, k].T for k in (1, 2, 3)])    # (3, S, S)
            bias = bias_vec.reshape(in_dim, 1)                       # broadcast over dim
        w_l.append(w)
        b_l.append(bias)

        # Norm affines, stored in the kernel's (seq, dim)-tile orientation.  The
        # PyTorch module initializes them to ones/zeros; we add a small perturbation
        # purely so the numerical test exercises the affine broadcast paths.
        key, s1, s2 = jax.random.split(key, 3)
        if norm_mode == "spatial":                                   # LN(180): per-channel
            a_shape = (1, 180)
        elif norm_mode == "temporal":                                # LN_v2(seq): per-seq
            a_shape = (seq, 1)
        elif norm_mode == "all":                                     # LayerNorm([dim, seq])
            a_shape = (seq, dim)
        else:                                                        # Identity
            a_shape = (1, 1)
        a_l.append(jnp.ones(a_shape, jnp.float32)
                   + 0.1 * jax.random.normal(s1, a_shape, jnp.float32))
        be_l.append(0.1 * jax.random.normal(s2, a_shape, jnp.float32))

    params = (jnp.stack(coeffs_l), jnp.stack(w_l), jnp.stack(b_l),
              jnp.stack(a_l), jnp.stack(be_l))
    return params, norm_mode


# ---------------- pure-JAX reference (correctness check only) ----------------
def _lucas_apply_ref(x, coeffs):
    """LucasKAN along the last axis; coeffs (in, out, degree+1)."""
    t = jnp.tanh(x)
    ls = [jnp.full_like(t, 2.0), t]
    for _ in range(2, coeffs.shape[-1]):
        ls.append(t * ls[-1] + ls[-2])
    basis = jnp.stack(ls, axis=-1)                                   # (..., in, K)
    return jnp.einsum("...ik,iok->...o", basis, coeffs)


def apply_kans_ref(x, coeffs, alpha, beta, *, use_spatial_fc, norm_mode, eps=1e-5):
    """Reference in the original (B, dim, seq) layout; alpha/beta stored transposed."""
    for l in range(coeffs.shape[0]):
        c, a, b = coeffs[l], alpha[l], beta[l]
        if use_spatial_fc:
            y = jnp.swapaxes(_lucas_apply_ref(jnp.swapaxes(x, 1, 2), c), 1, 2)
        else:
            y = _lucas_apply_ref(x, c)
        if norm_mode == "spatial":
            mean = y.mean(axis=1, keepdims=True)
            var = ((y - mean) ** 2).mean(axis=1, keepdims=True)
            y = (y - mean) / jnp.sqrt(var + eps) * a.T[None] + b.T[None]
        elif norm_mode == "temporal":
            mean = y.mean(axis=-1, keepdims=True)
            var = ((y - mean) ** 2).mean(axis=-1, keepdims=True)
            y = (y - mean) / jnp.sqrt(var + eps) * a.T[None] + b.T[None]
        elif norm_mode == "all":
            mean = y.mean(axis=(1, 2), keepdims=True)
            var = ((y - mean) ** 2).mean(axis=(1, 2), keepdims=True)
            y = (y - mean) / jnp.sqrt(var + eps) * a.T[None] + b.T[None]
        x = x + y
    return x


def _run_case(key, B, dim, seq, num_layers, use_spatial_fc, use_norm, layernorm_axis):
    kx, kp = jax.random.split(key)
    x = jax.random.normal(kx, (B, dim, seq), jnp.float32)
    (coeffs, w, bias, alpha, beta), norm_mode = init_params(
        kp, dim, seq, num_layers, use_spatial_fc, use_norm, layernorm_axis)
    out = jax.block_until_ready(
        apply_kans(x, w, bias, alpha, beta,
                   use_spatial_fc=use_spatial_fc, norm_mode=norm_mode))
    ref = apply_kans_ref(x, coeffs, alpha, beta,
                         use_spatial_fc=use_spatial_fc, norm_mode=norm_mode)
    np.testing.assert_allclose(np.asarray(out), np.asarray(ref), rtol=1e-4, atol=1e-4)


if __name__ == "__main__":
    key = jax.random.PRNGKey(0)
    k1, k2, k3, k4 = jax.random.split(key, 4)

    # Config 1: Temporal_KAN + LN(180) ('spatial' norm axis) — dim must be 180
    # because the module hardcodes LN(180).
    _run_case(k1, B=2, dim=180, seq=8, num_layers=3,
              use_spatial_fc=False, use_norm=True, layernorm_axis="spatial")

    # Config 2: Spatial_KAN + LN_v2(seq) ('temporal' norm axis).
    _run_case(k2, B=2, dim=32, seq=16, num_layers=2,
              use_spatial_fc=True, use_norm=True, layernorm_axis="temporal")

    # Config 3: Temporal_KAN + nn.LayerNorm([dim, seq]) ('all').
    _run_case(k3, B=2, dim=24, seq=16, num_layers=2,
              use_spatial_fc=False, use_norm=True, layernorm_axis="all")

    # Config 4: Spatial_KAN, no norm (Identity).
    _run_case(k4, B=2, dim=64, seq=8, num_layers=2,
              use_spatial_fc=True, use_norm=False, layernorm_axis="spatial")

    print("KERNEL_OK")
</pallas_src>

<mosaic_0001>
module attributes {stable_mosaic.version = 11 : i64} {
  func.func @kernel(%arg0: i32, %arg1: i32, %arg2: memref<1x8x180xf32, #tpu.memory_space<vmem>>, %arg3: memref<1x3x8x8xf32, #tpu.memory_space<vmem>>, %arg4: memref<1x8x1xf32, #tpu.memory_space<vmem>>, %arg5: memref<1x1x180xf32, #tpu.memory_space<vmem>>, %arg6: memref<1x1x180xf32, #tpu.memory_space<vmem>>, %arg7: memref<1x8x180xf32, #tpu.memory_space<vmem>>) attributes {dimension_semantics = [#tpu.dimension_semantics<parallel>, #tpu.dimension_semantics<arbitrary>], iteration_bounds = array<i64: 2, 3>, scalar_prefetch = 0 : i64, scratch_operands = 0 : i64, tpu.core_type = #tpu.core_type<tc>, window_params = [{transform_indices = @transform_0, window_bounds = array<i64: 1, 8, 180>}, {transform_indices = @transform_1, window_bounds = array<i64: 1, 3, 8, 8>}, {transform_indices = @transform_2, window_bounds = array<i64: 1, 8, 1>}, {transform_indices = @transform_3, window_bounds = array<i64: 1, 1, 180>}, {transform_indices = @transform_4, window_bounds = array<i64: 1, 1, 180>}, {transform_indices = @transform_5, window_bounds = array<i64: 1, 8, 180>}]} {
    %c0_i32 = arith.constant 0 : i32
    %0 = arith.cmpi eq, %arg1, %c0_i32 : i32
    %1 = arith.extui %0 : i1 to i32
    %c0_i32_0 = arith.constant 0 : i32
    %2 = arith.cmpi ne, %1, %c0_i32_0 : i32
    scf.if %2 {
      %c0_33 = arith.constant 0 : index
      %c0_34 = arith.constant 0 : index
      %c0_35 = arith.constant 0 : index
      %56 = vector.load %arg2[%c0_33, %c0_34, %c0_35] : memref<1x8x180xf32, #tpu.memory_space<vmem>>, vector<1x8x180xf32>
      %57 = vector.shape_cast %56 : vector<1x8x180xf32> to vector<8x180xf32>
      %c0_36 = arith.constant 0 : index
      %c0_37 = arith.constant 0 : index
      %c0_38 = arith.constant 0 : index
      %58 = vector.load %arg7[%c0_36, %c0_37, %c0_38] : memref<1x8x180xf32, #tpu.memory_space<vmem>>, vector<1x8x180xf32>
      %59 = vector.shape_cast %58 : vector<1x8x180xf32> to vector<8x180xf32>
      %60 = vector.shape_cast %57 : vector<8x180xf32> to vector<1x8x180xf32>
      tpu.vector_store %arg7[%c0_36, %c0_37, %c0_38], %60 {strides = array<i32>} : memref<1x8x180xf32, #tpu.memory_space<vmem>>, vector<1x8x180xf32>,
    } else {
    }
    %c0 = arith.constant 0 : index
    %c0_1 = arith.constant 0 : index
    %c0_2 = arith.constant 0 : index
    %3 = vector.load %arg7[%c0, %c0_1, %c0_2] : memref<1x8x180xf32, #tpu.memory_space<vmem>>, vector<1x8x180xf32>
    %4 = vector.shape_cast %3 : vector<1x8x180xf32> to vector<8x180xf32>
    %5 = math.tanh %4 : vector<8x180xf32>
    %6 = arith.mulf %5, %5 : vector<8x180xf32>
    %cst = arith.constant 2.000000e+00 : f32
    %7 = vector.broadcast %cst : f32 to vector<8x180xf32>
    %8 = arith.addf %6, %7 : vector<8x180xf32>
    %9 = arith.mulf %5, %8 : vector<8x180xf32>
    %10 = arith.addf %9, %5 : vector<8x180xf32>
    %c0_3 = arith.constant 0 : index
    %c0_4 = arith.constant 0 : index
    %c0_5 = arith.constant 0 : index
    %11 = vector.load %arg4[%c0_3, %c0_4, %c0_5] : memref<1x8x1xf32, #tpu.memory_space<vmem>>, vector<1x8x1xf32>
    %12 = vector.shape_cast %11 : vector<1x8x1xf32> to vector<8x1xf32>
    %c0_6 = arith.constant 0 : index
    %c0_7 = arith.constant 0 : index
    %c0_8 = arith.constant 0 : index
    %c0_9 = arith.constant 0 : index
    %13 = vector.load %arg3[%c0_6, %c0_7, %c0_8, %c0_9] : memref<1x3x8x8xf32, #tpu.memory_space<vmem>>, vector<1x1x8x8xf32>
    %14 = vector.shape_cast %13 : vector<1x1x8x8xf32> to vector<8x8xf32>
    %cst_10 = arith.constant dense<0.000000e+00> : vector<8x180xf32>
    %15 = tpu.matmul %14, %5, %cst_10 {dimension_numbers = #tpu.dot_dimension_numbers<[1], [0], [0], [1], [0, 0, 1, 1], [], []>} : vector<8x8xf32>, vector<8x180xf32>, vector<8x180xf32> -> vector<8x180xf32>
    %c0_11 = arith.constant 0 : index
    %c1 = arith.constant 1 : index
    %c0_12 = arith.constant 0 : index
    %c0_13 = arith.constant 0 : index
    %16 = vector.load %arg3[%c0_11, %c1, %c0_12, %c0_13] : memref<1x3x8x8xf32, #tpu.memory_space<vmem>>, vector<1x1x8x8xf32>
    %17 = vector.shape_cast %16 : vector<1x1x8x8xf32> to vector<8x8xf32>
    %cst_14 = arith.constant dense<0.000000e+00> : vector<8x180xf32>
    %18 = tpu.matmul %17, %8, %cst_14 {dimension_numbers = #tpu.dot_dimension_numbers<[1], [0], [0], [1], [0, 0, 1, 1], [], []>} : vector<8x8xf32>, vector<8x180xf32>, vector<8x180xf32> -> vector<8x180xf32>
    %19 = arith.addf %15, %18 : vector<8x180xf32>
    %c0_15 = arith.constant 0 : index
    %c2 = arith.constant 2 : index
    %c0_16 = arith.constant 0 : index
    %c0_17 = arith.constant 0 : index
    %20 = vector.load %arg3[%c0_15, %c2, %c0_16, %c0_17] : memref<1x3x8x8xf32, #tpu.memory_space<vmem>>, vector<1x1x8x8xf32>
    %21 = vector.shape_cast %20 : vector<1x1x8x8xf32> to vector<8x8xf32>
    %cst_18 = arith.constant dense<0.000000e+00> : vector<8x180xf32>
    %22 = tpu.matmul %21, %10, %cst_18 {dimension_numbers = #tpu.dot_dimension_numbers<[1], [0], [0], [1], [0, 0, 1, 1], [], []>} : vector<8x8xf32>, vector<8x180xf32>, vector<8x180xf32> -> vector<8x180xf32>
    %23 = arith.addf %19, %22 : vector<8x180xf32>
    %24 = vector.broadcast %12 : vector<8x1xf32> to vector<8x180xf32>
    %25 = arith.addf %23, %24 : vector<8x180xf32>
    %cst_19 = arith.constant dense<0.000000e+00> : vector<8xf32>
    %26 = vector.multi_reduction <add>, %25, %cst_19 [1] : vector<8x180xf32> to vector<8xf32>
    %27 = vector.shape_cast %26 : vector<8xf32> to vector<8x1xf32>
    %cst_20 = arith.constant 1.800000e+02 : f32
    %28 = vector.broadcast %cst_20 : f32 to vector<8x1xf32>
    %29 = arith.divf %27, %28 : vector<8x1xf32>
    %30 = vector.broadcast %29 : vector<8x1xf32> to vector<8x180xf32>
    %31 = arith.subf %25, %30 : vector<8x180xf32>
    %32 = arith.mulf %31, %31 : vector<8x180xf32>
    %cst_21 = arith.constant dense<0.000000e+00> : vector<8xf32>
    %33 = vector.multi_reduction <add>, %32, %cst_21 [1] : vector<8x180xf32> to vector<8xf32>
    %34 = vector.shape_cast %33 : vector<8xf32> to vector<8x1xf32>
    %cst_22 = arith.constant 1.800000e+02 : f32
    %35 = vector.broadcast %cst_22 : f32 to vector<8x1xf32>
    %36 = arith.divf %34, %35 : vector<8x1xf32>
    %37 = vector.broadcast %29 : vector<8x1xf32> to vector<8x180xf32>
    %38 = arith.subf %25, %37 : vector<8x180xf32>
    %cst_23 = arith.constant 9.99999974E-6 : f32
    %39 = vector.broadcast %cst_23 : f32 to vector<8x1xf32>
    %40 = arith.addf %36, %39 : vector<8x1xf32>
    %41 = math.rsqrt %40 : vector<8x1xf32>
    %42 = vector.broadcast %41 : vector<8x1xf32> to vector<8x180xf32>
    %43 = arith.mulf %38, %42 : vector<8x180xf32>
    %c0_24 = arith.constant 0 : index
    %c0_25 = arith.constant 0 : index
    %c0_26 = arith.constant 0 : index
    %44 = vector.load %arg5[%c0_24, %c0_25, %c0_26] : memref<1x1x180xf32, #tpu.memory_space<vmem>>, vector<1x1x180xf32>
    %45 = vector.shape_cast %44 : vector<1x1x180xf32> to vector<1x180xf32>
    %46 = vector.broadcast %45 : vector<1x180xf32> to vector<8x180xf32>
    %47 = arith.mulf %43, %46 : vector<8x180xf32>
    %c0_27 = arith.constant 0 : index
    %c0_28 = arith.constant 0 : index
    %c0_29 = arith.constant 0 : index
    %48 = vector.load %arg6[%c0_27, %c0_28, %c0_29] : memref<1x1x180xf32, #tpu.memory_space<vmem>>, vector<1x1x180xf32>
    %49 = vector.shape_cast %48 : vector<1x1x180xf32> to vector<1x180xf32>
    %50 = vector.broadcast %49 : vector<1x180xf32> to vector<8x180xf32>
    %51 = arith.addf %47, %50 : vector<8x180xf32>
    %52 = arith.addf %4, %51 : vector<8x180xf32>
    %c0_30 = arith.constant 0 : index
    %c0_31 = arith.constant 0 : index
    %c0_32 = arith.constant 0 : index
    %53 = vector.load %arg7[%c0_30, %c0_31, %c0_32] : memref<1x8x180xf32, #tpu.memory_space<vmem>>, vector<1x8x180xf32>
    %54 = vector.shape_cast %53 : vector<1x8x180xf32> to vector<8x180xf32>
    %55 = vector.shape_cast %52 : vector<8x180xf32> to vector<1x8x180xf32>
    tpu.vector_store %arg7[%c0_30, %c0_31, %c0_32], %55 {strides = array<i32>} : memref<1x8x180xf32, #tpu.memory_space<vmem>>, vector<1x8x180xf32>,
    return
  }
  func.func @transform_0(%arg0: i32, %arg1: i32) -> (i32, i32, i32) {
    %c0_i32 = arith.constant 0 : i32
    %c0_i32_0 = arith.constant 0 : i32
    %c0_i32_1 = arith.constant 0 : i32
    return %arg0, %c0_i32, %c0_i32_0 : i32, i32, i32
  }
  func.func @transform_1(%arg0: i32, %arg1: i32) -> (i32, i32, i32, i32) {
    %c0_i32 = arith.constant 0 : i32
    %c0_i32_0 = arith.constant 0 : i32
    %c0_i32_1 = arith.constant 0 : i32
    %c0_i32_2 = arith.constant 0 : i32
    return %arg1, %c0_i32, %c0_i32_0, %c0_i32_1 : i32, i32, i32, i32
  }
  func.func @transform_2(%arg0: i32, %arg1: i32) -> (i32, i32, i32) {
    %c0_i32 = arith.constant 0 : i32
    %c0_i32_0 = arith.constant 0 : i32
    %c0_i32_1 = arith.constant 0 : i32
    return %arg1, %c0_i32, %c0_i32_0 : i32, i32, i32
  }
  func.func @transform_3(%arg0: i32, %arg1: i32) -> (i32, i32, i32) {
    %c0_i32 = arith.constant 0 : i32
    %c0_i32_0 = arith.constant 0 : i32
    %c0_i32_1 = arith.constant 0 : i32
    return %arg1, %c0_i32, %c0_i32_0 : i32, i32, i32
  }
  func.func @transform_4(%arg0: i32, %arg1: i32) -> (i32, i32, i32) {
    %c0_i32 = arith.constant 0 : i32
    %c0_i32_0 = arith.constant 0 : i32
    %c0_i32_1 = arith.constant 0 : i32
    return %arg1, %c0_i32, %c0_i32_0 : i32, i32, i32
  }
  func.func @transform_5(%arg0: i32, %arg1: i32) -> (i32, i32, i32) {
    %c0_i32 = arith.constant 0 : i32
    %c0_i32_0 = arith.constant 0 : i32
    %c0_i32_1 = arith.constant 0 : i32
    return %arg0, %c0_i32, %c0_i32_0 : i32, i32, i32
  }
}

</mosaic_0001>

<llo_original>
// kernel: tpu_custom_call.1
$region0: #{tpu_custom_call.1}
  #allocation0 [shape = 'u32[]', space=smem, size = 0x4, offset = 0x4, fixed_abs, tag = 'smem constant byte address 0x4 - core index']
  #allocation1 [shape = 'u32[72,128]{1,0:T(1,128)}', space=vmem, size = 0x9000, scoped, tag = 'internal scratch']
  %s0 = inlined_call_operand.hbm [shape: f32[2,8,180], index: 0, kind: input, shape index: {}]
  %s1 = inlined_call_operand.hbm [shape: f32[3,3,8,8], index: 1, kind: input, shape index: {}]
  %s2 = inlined_call_operand.vmem [shape: f32[3,8,1], index: 2, kind: input, shape index: {}]
  %s3 = inlined_call_operand.vmem [shape: f32[3,1,180], index: 3, kind: input, shape index: {}]
  %s4 = inlined_call_operand.vmem [shape: f32[3,1,180], index: 4, kind: input, shape index: {}]
  %s5 = inlined_call_operand.hbm [shape: f32[2,8,180], index: 5, kind: output, shape index: {}]
  %s6 = sld [smem:[#allocation0]]
  $region65: #{tpu_custom_call.1} parent=0
    _
  %s8 = ssub.s32 1, %s6
  %s9 = scalar_select 0, %s8, %s6
  $region1: #{tpu_custom_call.1} parent=0
    #allocation2 [shape = 'u8[16384]{0}', space=vmem, size = 0x4000, scoped, tag = 'input window, operand 0']
    #allocation3 [shape = 's32[2]{0}', space=sflag, size = 0x8, scoped, tag = 'scoped memory for tpu_custom_call.1']
    #allocation4 [shape = 's32[2]{0}', space=sflag, size = 0x8, scoped, tag = 'scoped memory for tpu_custom_call.1']
    #allocation5 [shape = 'u8[24576]{0}', space=vmem, size = 0x6000, scoped, tag = 'input window, operand 1']
    #allocation6 [shape = 's32[2]{0}', space=sflag, size = 0x8, scoped, tag = 'scoped memory for tpu_custom_call.1']
    #allocation7 [shape = 'u8[16384]{0}', space=vmem, size = 0x4000, scoped, tag = 'output window, operand 0']
    %10 = vsyncpa [#allocation3], 0
    %s11 = scalar_lea.sflag [#allocation3], 1
    %12 = vsyncpa %s11, 0
    %13 = vsyncpa [#allocation6], 0
    %s14 = scalar_lea.sflag [#allocation6], 1
    %15 = vsyncpa %s14, 0
    %16 = vsyncpa [#allocation4], 0
    %s17 = scalar_lea.sflag [#allocation4], 1
    %18 = vsyncpa %s17, 0
    loop: start=0, step=1, limit=8
    $region2: #{tpu_custom_call.1} parent=1 // loop_pre_header
      _
    $region3: #{tpu_custom_call.1} parent=1 // loop_header
      %s20 = sphi 0, %s24
      %p21 = scmp.ge.s32.totalorder %s20, 8
      %s27 = sphi 0, %s39
      %s28 = sphi 0, %s35
      %s29 = sphi 0, %s27
      %s30 = sphi 0, %s28
      %s31 = sphi 0, %s29
      %s32 = sphi 0, %s30
      %s42 = sphi 0, %s44
      %s45 = sphi 0, %s42
      %s46 = sphi 0, %s45
      %s62 = sphi 0, %s46
      %s68 = sphi 0, %s70
      %s71 = sphi 0, %s68
      %s72 = sphi 0, %s71
      %s88 = sphi 0, %s72
      %s94 = sphi 0, %s96
      %s97 = sphi 0, %s94
      %s98 = sphi 0, %s97
      %s114 = sphi 0, %s98
      %s120 = sphi 0, %s122
      %s123 = sphi 0, %s120
      %s124 = sphi 0, %s123
      %s140 = sphi 0, %s124
      %s146 = sphi 0, %s148
      %s149 = sphi 0, %s146
      %s150 = sphi 0, %s149
      %s166 = sphi 0, %s150
      %s172 = sphi 0, %s174
      %s175 = sphi 0, %s172
      %s176 = sphi 0, %s175
      %s192 = sphi 0, %s176
    $region4: #{tpu_custom_call.1} parent=1 // loop_header_branch
      %23 = sbr.rel (%p21) target = $region8
    $region5: #{tpu_custom_call.1} parent=1 // loop_body
      %s25 = ssub.s32 %s20, 1
      %s26 = ssub.s32 %s20, 2
      %s33 = sadd.s32 1, %s28
      %p34 = scmp.ge.s32.totalorder %s33, 3
      %s35 = scalar_select %p34, 0, %s33
      %s36 = sadd.s32 1, %s27
      %s37 = scalar_select %p34, %s36, %s27
      %p38 = scmp.ge.s32.totalorder %s37, 2
      %s39 = scalar_select %p38, 0, %s37
      %s40 = ssub.s32 %s27, %s39
      %p41 = scmp.eq.s32.totalorder %s40, 0
      %s43 = sadd.s32 %s42, 1
      %s44 = scalar_select %p41, %s42, %s43
      %p47 = pneg %p41
      %p48 = scmp.eq.s32.totalorder %s20, 5
      %p49 = por %p47, %p48
      %p50 = scmp.ne.s32.totalorder %s42, %s45
      %p51 = scmp.eq.s32.totalorder %s20, 0
      %p52 = por %p50, %p51
      %p53 = scmp.ne.s32.totalorder %s42, %s45
      %p54 = scmp.eq.s32.totalorder %s25, 5
      %p55 = por %p53, %p54
      %p56 = scmp.ne.s32.totalorder %s45, %s46
      %p57 = scmp.eq.s32.totalorder %s25, 0
      %p58 = por %p56, %p57
      %p59 = scmp.ne.s32.totalorder %s45, %s46
      %p60 = scmp.eq.s32.totalorder %s26, 5
      %p61 = por %p59, %p60
      %p63 = scmp.ne.s32.totalorder %s46, %s62
      %p64 = scmp.eq.s32.totalorder %s26, 0
      %p65 = por %p63, %p64
      %s66 = ssub.s32 %s28, %s35
      %p67 = scmp.eq.s32.totalorder %s66, 0
      %s69 = sadd.s32 %s68, 1
      %s70 = scalar_select %p67, %s68, %s69
      %p73 = pneg %p67
      %p74 = scmp.eq.s32.totalorder %s20, 5
      %p75 = por %p73, %p74
      %p76 = scmp.ne.s32.totalorder %s68, %s71
      %p77 = scmp.eq.s32.totalorder %s20, 0
      %p78 = por %p76, %p77
      %p79 = scmp.ne.s32.totalorder %s68, %s71
      %p80 = scmp.eq.s32.totalorder %s25, 5
      %p81 = por %p79, %p80
      %p82 = scmp.ne.s32.totalorder %s71, %s72
      %p83 = scmp.eq.s32.totalorder %s25, 0
      %p84 = por %p82, %p83
      %p85 = scmp.ne.s32.totalorder %s71, %s72
      %p86 = scmp.eq.s32.totalorder %s26, 5
      %p87 = por %p85, %p86
      %p89 = scmp.ne.s32.totalorder %s72, %s88
      %p90 = scmp.eq.s32.totalorder %s26, 0
      %p91 = por %p89, %p90
      %s92 = ssub.s32 %s28, %s35
      %p93 = scmp.eq.s32.totalorder %s92, 0
      %s95 = sadd.s32 %s94, 1
      %s96 = scalar_select %p93, %s94, %s95
      %p99 = pneg %p93
      %p100 = scmp.eq.s32.totalorder %s20, 5
      %p101 = por %p99, %p100
      %p102 = scmp.ne.s32.totalorder %s94, %s97
      %p103 = scmp.eq.s32.totalorder %s20, 0
      %p104 = por %p102, %p103
      %p105 = scmp.ne.s32.totalorder %s94, %s97
      %p106 = scmp.eq.s32.totalorder %s25, 5
      %p107 = por %p105, %p106
      %p108 = scmp.ne.s32.totalorder %s97, %s98
      %p109 = scmp.eq.s32.totalorder %s25, 0
      %p110 = por %p108, %p109
      %p111 = scmp.ne.s32.totalorder %s97, %s98
      %p112 = scmp.eq.s32.totalorder %s26, 5
      %p113 = por %p111, %p112
      %p115 = scmp.ne.s32.totalorder %s98, %s114
      %p116 = scmp.eq.s32.totalorder %s26, 0
      %p117 = por %p115, %p116
      %s118 = ssub.s32 %s28, %s35
      %p119 = scmp.eq.s32.totalorder %s118, 0
      %s121 = sadd.s32 %s120, 1
      %s122 = scalar_select %p119, %s120, %s121
      %p125 = pneg %p119
      %p126 = scmp.eq.s32.totalorder %s20, 5
      %p127 = por %p125, %p126
      %p128 = scmp.ne.s32.totalorder %s120, %s123
      %p129 = scmp.eq.s32.totalorder %s20, 0
      %p130 = por %p128, %p129
      %p131 = scmp.ne.s32.totalorder %s120, %s123
      %p132 = scmp.eq.s32.totalorder %s25, 5
      %p133 = por %p131, %p132
      %p134 = scmp.ne.s32.totalorder %s123, %s124
      %p135 = scmp.eq.s32.totalorder %s25, 0
      %p136 = por %p134, %p135
      %p137 = scmp.ne.s32.totalorder %s123, %s124
      %p138 = scmp.eq.s32.totalorder %s26, 5
      %p139 = por %p137, %p138
      %p141 = scmp.ne.s32.totalorder %s124, %s140
      %p142 = scmp.eq.s32.totalorder %s26, 0
      %p143 = por %p141, %p142
      %s144 = ssub.s32 %s28, %s35
      %p145 = scmp.eq.s32.totalorder %s144, 0
      %s147 = sadd.s32 %s146, 1
      %s148 = scalar_select %p145, %s146, %s147
      %p151 = pneg %p145
      %p152 = scmp.eq.s32.totalorder %s20, 5
      %p153 = por %p151, %p152
      %p154 = scmp.ne.s32.totalorder %s146, %s149
      %p155 = scmp.eq.s32.totalorder %s20, 0
      %p156 = por %p154, %p155
      %p157 = scmp.ne.s32.totalorder %s146, %s149
      %p158 = scmp.eq.s32.totalorder %s25, 5
      %p159 = por %p157, %p158
      %p160 = scmp.ne.s32.totalorder %s149, %s150
      %p161 = scmp.eq.s32.totalorder %s25, 0
      %p162 = por %p160, %p161
      %p163 = scmp.ne.s32.totalorder %s149, %s150
      %p164 = scmp.eq.s32.totalorder %s26, 5
      %p165 = por %p163, %p164
      %p167 = scmp.ne.s32.totalorder %s150, %s166
      %p168 = scmp.eq.s32.totalorder %s26, 0
      %p169 = por %p167, %p168
      %s170 = ssub.s32 %s27, %s39
      %p171 = scmp.eq.s32.totalorder %s170, 0
      %s173 = sadd.s32 %s172, 1
      %s174 = scalar_select %p171, %s172, %s173
      %p177 = pneg %p171
      %p178 = scmp.eq.s32.totalorder %s20, 5
      %p179 = por %p177, %p178
      %p180 = scmp.ne.s32.totalorder %s172, %s175
      %p181 = scmp.eq.s32.totalorder %s20, 0
      %p182 = por %p180, %p181
      %p183 = scmp.ne.s32.totalorder %s172, %s175
      %p184 = scmp.eq.s32.totalorder %s25, 5
      %p185 = por %p183, %p184
      %p186 = scmp.ne.s32.totalorder %s175, %s176
      %p187 = scmp.eq.s32.totalorder %s25, 0
      %p188 = por %p186, %p187
      %p189 = scmp.ne.s32.totalorder %s175, %s176
      %p190 = scmp.eq.s32.totalorder %s26, 5
      %p191 = por %p189, %p190
      %p193 = scmp.ne.s32.totalorder %s176, %s192
      %p194 = scmp.eq.s32.totalorder %s26, 0
      %p195 = por %p193, %p194
      %p196 = scmp.le.s32.totalorder 1, %s20
      %p197 = scmp.lt.s32.totalorder %s20, 7
      %p198 = pnand %p196, %p197
      %p199 = pneg %p198
      // Predicated region
      $region9: #{tpu_custom_call.1} parent=5 // pred_check
        _
      $region10: #{tpu_custom_call.1} parent=5 // pred_check_branch
        %201 = sbr.rel (%p198) target = $region12
      $region11: #{tpu_custom_call.1} parent=5 // pred_region
        %s202 = ssub.s32 %s20, 1
      $region12: #{tpu_custom_call.1} parent=5 // pred_fallthru
        _
      %p203 = scmp.lt.s32.totalorder %s20, 6
      // Predicated region
      $region13: #{tpu_custom_call.1} parent=5 // pred_check
        %p204 = pneg %p203
      $region14: #{tpu_custom_call.1} parent=5 // pred_check_branch
        %206 = sbr.rel (%p204) target = $region16
      $region15: #{tpu_custom_call.1} parent=5 // pred_region
        // Predicated region
        $region17: #{tpu_custom_call.1} parent=15 // pred_check
          %p207 = pneg %p52
        $region18: #{tpu_custom_call.1} parent=15 // pred_check_branch
          %209 = sbr.rel (%p207) target = $region20
        $region19: #{tpu_custom_call.1} parent=15 // pred_region
          %s210 = sand.u32 %s42, 1
          %s211 = scalar_lea.sflag [#allocation3], %s210
          %s212 = sand.u32 %s42, 1
          %s213 = smul.addr %s212, 16
          %s214 = scalar_lea.vmem [#allocation2], %s213
          %216 = vsyncadd %s211, 0
          %s217 = smul.addr %s27, 2
          %s218 = smul.addr %s217, 8
          %s219 = scalar_lea.hbm %s0, %s218
          %s221 = sshll.u32 %s219, 4
          %s222 = int_to_ptr.hbm [resolvable:$true] %s221
          %s223 = sshll.u32 %s214, 4
          %s224 = int_to_ptr.vmem [resolvable:$true] %s223
          %226 = dma.hbm_to_vmem [thread:$0]  %s222, 256, %s224, %s211
        $region20: #{tpu_custom_call.1} parent=15 // pred_fallthru
          _
        // Predicated region
        $region21: #{tpu_custom_call.1} parent=15 // pred_check
          %p227 = pneg %p78
        $region22: #{tpu_custom_call.1} parent=15 // pred_check_branch
          %229 = sbr.rel (%p227) target = $region24
        $region23: #{tpu_custom_call.1} parent=15 // pred_region
          %s230 = sand.u32 %s68, 1
          %s231 = scalar_lea.sflag [#allocation6], %s230
          %s232 = sand.u32 %s68, 1
          %s233 = smul.addr %s232, 24
          %s234 = scalar_lea.vmem [#allocation5], %s233
          %236 = vsyncadd %s231, 0
          %s237 = smul.addr %s28, 3
          %s238 = smul.addr %s237, 8
          %s239 = scalar_lea.hbm %s1, %s238
          %s240 = sshll.u32 %s239, 4
          %s241 = int_to_ptr.hbm [resolvable:$true] %s240
          %s242 = sshll.u32 %s234, 4
          %s243 = int_to_ptr.vmem [resolvable:$true] %s242
          %248 = dma.hbm_to_vmem [thread:$0]  %s241, 384, %s243, %s231, 128, 128, 8
        $region24: #{tpu_custom_call.1} parent=15 // pred_fallthru
          _
        // Predicated region
        $region25: #{tpu_custom_call.1} parent=15 // pred_check
          %p249 = pneg %p104
        $region26: #{tpu_custom_call.1} parent=15 // pred_check_branch
          %251 = sbr.rel (%p249) target = $region28
        $region27: #{tpu_custom_call.1} parent=15 // pred_region
          %p252 = scmp.lt.s32.totalorder %s28, 2
          %s253 = scalar_select %p252, %s28, 2
          %s254 = smul.addr %s253, 8
          %s255 = scalar_lea.vmem %s2, %s254
        $region28: #{tpu_custom_call.1} parent=15 // pred_fallthru
          _
        // Predicated region
        $region29: #{tpu_custom_call.1} parent=15 // pred_check
          %p256 = pneg %p130
        $region30: #{tpu_custom_call.1} parent=15 // pred_check_branch
          %258 = sbr.rel (%p256) target = $region32
        $region31: #{tpu_custom_call.1} parent=15 // pred_region
          %p259 = scmp.lt.s32.totalorder %s28, 2
          %s260 = scalar_select %p259, %s28, 2
          %s261 = smul.addr %s260, 2
          %s262 = scalar_lea.vmem %s3, %s261
        $region32: #{tpu_custom_call.1} parent=15 // pred_fallthru
          _
        // Predicated region
        $region33: #{tpu_custom_call.1} parent=15 // pred_check
          %p263 = pneg %p156
        $region34: #{tpu_custom_call.1} parent=15 // pred_check_branch
          %265 = sbr.rel (%p263) target = $region36
        $region35: #{tpu_custom_call.1} parent=15 // pred_region
          %p266 = scmp.lt.s32.totalorder %s28, 2
          %s267 = scalar_select %p266, %s28, 2
          %s268 = smul.addr %s267, 2
          %s269 = scalar_lea.vmem %s4, %s268
        $region36: #{tpu_custom_call.1} parent=15 // pred_fallthru
          _
      $region16: #{tpu_custom_call.1} parent=5 // pred_fallthru
        _
      %p270 = scmp.le.s32.totalorder 1, %s20
      %p271 = scmp.lt.s32.totalorder %s20, 7
      %p272 = pnand %p270, %p271
      %p273 = pneg %p272
      // Predicated region
      $region37: #{tpu_custom_call.1} parent=5 // pred_check
        _
      $region38: #{tpu_custom_call.1} parent=5 // pred_check_branch
        %275 = sbr.rel (%p272) target = $region40
      $region39: #{tpu_custom_call.1} parent=5 // pred_region
        %s276 = ssub.s32 %s20, 1
        %s277 = sand.u32 %s45, 1
        %s278 = scalar_lea.sflag [#allocation3], %s277
        %s279 = sand.u32 %s45, 1
        %s280 = smul.addr %s279, 16
        %s281 = scalar_lea.vmem [#allocation2], %s280
        // Predicated region
        $region41: #{tpu_custom_call.1} parent=39 // pred_check
          %p282 = pneg %p58
        $region42: #{tpu_custom_call.1} parent=39 // pred_check_branch
          %284 = sbr.rel (%p282) target = $region44
        $region43: #{tpu_custom_call.1} parent=39 // pred_region
          %286 = dma.done %s278, 256
        $region44: #{tpu_custom_call.1} parent=39 // pred_fallthru
          _
        %s287 = sand.u32 %s71, 1
        %s288 = scalar_lea.sflag [#allocation6], %s287
        %s289 = sand.u32 %s71, 1
        %s290 = smul.addr %s289, 24
        %s291 = scalar_lea.vmem [#allocation5], %s290
        // Predicated region
        $region45: #{tpu_custom_call.1} parent=39 // pred_check
          %p292 = pneg %p84
        $region46: #{tpu_custom_call.1} parent=39 // pred_check_branch
          %294 = sbr.rel (%p292) target = $region48
        $region47: #{tpu_custom_call.1} parent=39 // pred_region
          %296 = dma.done %s288, 384
        $region48: #{tpu_custom_call.1} parent=39 // pred_fallthru
          _
        %s297 = sand.u32 %s45, 1
        %s298 = scalar_lea.sflag [#allocation3], %s297
        %s299 = sand.u32 %s45, 1
        %s300 = smul.addr %s299, 16
        %s301 = scalar_lea.vmem [#allocation2], %s300
        %p302 = pneg %p58
        %p303 = pneg %p55
        %s304 = sand.u32 %s71, 1
        %s305 = scalar_lea.sflag [#allocation6], %s304
        %s306 = sand.u32 %s71, 1
        %s307 = smul.addr %s306, 24
        %s308 = scalar_lea.vmem [#allocation5], %s307
        %p309 = pneg %p84
        %p310 = pneg %p81
        %p311 = scmp.lt.s32.totalorder %s30, 2
        %s312 = scalar_select %p311, %s30, 2
        %s313 = smul.addr %s312, 8
        %s314 = scalar_lea.vmem %s2, %s313
        %p315 = pneg %p110
        %p316 = pneg %p107
        %p317 = scmp.lt.s32.totalorder %s30, 2
        %s318 = scalar_select %p317, %s30, 2
        %s319 = smul.addr %s318, 2
        %s320 = scalar_lea.vmem %s3, %s319
        %p321 = pneg %p136
        %p322 = pneg %p133
        %p323 = scmp.lt.s32.totalorder %s30, 2
        %s324 = scalar_select %p323, %s30, 2
        %s325 = smul.addr %s324, 2
        %s326 = scalar_lea.vmem %s4, %s325
        %p327 = pneg %p162
        %p328 = pneg %p159
        %p329 = pneg %p188
        %p330 = pneg %p185
        %s331 = sand.u32 %s175, 1
        %s332 = scalar_lea.sflag [#allocation4], %s331
        %s333 = sand.u32 %s175, 1
        %s334 = smul.addr %s333, 16
        %s335 = scalar_lea.vmem [#allocation7], %s334
        %p336 = scmp.lt.s32.totalorder %s30, 2
        %s337 = scalar_select %p336, %s30, 2
        %s338 = smul.addr %s337, 8
        %s339 = scalar_lea.vmem %s2, %s338
        %p340 = scmp.lt.s32.totalorder %s30, 2
        %s341 = scalar_select %p340, %s30, 2
        %s342 = smul.addr %s341, 2
        %s343 = scalar_lea.vmem %s3, %s342
        %p344 = scmp.lt.s32.totalorder %s30, 2
        %s345 = scalar_select %p344, %s30, 2
        %s346 = smul.addr %s345, 2
        %s347 = scalar_lea.vmem %s4, %s346
        %p348 = scmp.eq.s32.totalorder %s30, 0
        // Predicated region
        $region49: #{tpu_custom_call.1} parent=39 // pred_check
          %p349 = pneg %p348
        $region50: #{tpu_custom_call.1} parent=39 // pred_check_branch
          %351 = sbr.rel (%p349) target = $region52
        $region51: #{tpu_custom_call.1} parent=39 // pred_region
          %v352 = vld [vmem:[%s281] sm:$0xff]
          %v353 = vld [vmem:[%s281 + $0x8] sm:$0xff]
          %354 = vst [vmem:[%s335] sm:$0xff] %v352
          %vm355 = vcmask 424960
          %356 = vst.msk [vmem:[%s335 + $0x8] sm:$0xff] %vm355, %v353
        $region52: #{tpu_custom_call.1} parent=39 // pred_fallthru
          _
        %v357 = vld [vmem:[%s335] sm:$0xff]
        %v358 = vld [vmem:[%s335 + $0x8] sm:$0xff]
        %v359 = vtanh.pop %v357
        %v360 = vtanh.pop %v358
        %v361 = vmul.f32 %v359, %v359
        %v362 = vmul.f32 %v360, %v360
        %v363 = vadd.f32 %v361, 2.0
        %v364 = vadd.f32 %v362, 2.0
        %v365 = vmul.f32 %v359, %v363
        %v366 = vmul.f32 %v360, %v364
        %v367 = vadd.f32 %v365, %v359
        %v368 = vadd.f32 %v366, %v360
        %v369 = vld [vmem:[%s339] sm:$0xff]
        %v370 = vld [vmem:[%s291] sm:$0xff]
        %s371 = scalar_lea.vmem %s291, 8 [#allocation5]
        %v372 = vld [vmem:[%s371] sm:$0xff]
        %vm373 = vcmask 64512
        %v375 = vsel %vm373, %v372, 0
        %377 = vmatpush.msra.mxu0 0.0
        %378 = vmatpush.msra.mxu0 0.0
        %379 = vmatpush.msra.mxu0 0.0
        %380 = vmatpush.msra.mxu0 0.0
        %381 = vmatpush.msra.mxu0 0.0
        %382 = vmatpush.msra.mxu0 0.0
        %383 = vmatpush.msra.mxu0 0.0
        %384 = vmatpush.msra.mxu0 0.0
        %385 = vmatpush.msra.mxu0 0.0
        %386 = vmatpush.msra.mxu0 0.0
        %387 = vmatpush.msra.mxu0 0.0
        %388 = vmatpush.msra.mxu0 0.0
        %389 = vmatpush.msra.mxu0 0.0
        %390 = vmatpush.msra.mxu0 0.0
        %391 = vmatpush.msra.mxu0 0.0
        %392 = vmatpush.msra.mxu0 %v363
        %393 = vmatmul.f32.gmra.mxu0 %v375
        %v394 = vpop.f32.mrf.mxu0
        %v395 = vadd.f32 0.0, %v394
        %396 = vdwg.mxu0
        %397 = vmatpush.msra.mxu0 0.0
        %398 = vmatpush.msra.mxu0 0.0
        %399 = vmatpush.msra.mxu0 0.0
        %400 = vmatpush.msra.mxu0 0.0
        %401 = vmatpush.msra.mxu0 0.0
        %402 = vmatpush.msra.mxu0 0.0
        %403 = vmatpush.msra.mxu0 0.0
        %404 = vmatpush.msra.mxu0 0.0
        %405 = vmatpush.msra.mxu0 0.0
        %406 = vmatpush.msra.mxu0 0.0
        %407 = vmatpush.msra.mxu0 0.0
        %408 = vmatpush.msra.mxu0 0.0
        %409 = vmatpush.msra.mxu0 0.0
        %410 = vmatpush.msra.mxu0 0.0
        %411 = vmatpush.msra.mxu0 0.0
        %412 = vmatpush.msra.mxu0 %v364
        %413 = vmatmul.f32.gmra.mxu0 %v375
        %v414 = vpop.f32.mrf.mxu0
        %v415 = vadd.f32 0.0, %v414
        %416 = vdwg.mxu0
        %v418 = vsel %vm373, %v370, 0
        %420 = vmatpush.msra.mxu0 0.0
        %421 = vmatpush.msra.mxu0 0.0
        %422 = vmatpush.msra.mxu0 0.0
        %423 = vmatpush.msra.mxu0 0.0
        %424 = vmatpush.msra.mxu0 0.0
        %425 = vmatpush.msra.mxu0 0.0
        %426 = vmatpush.msra.mxu0 0.0
        %427 = vmatpush.msra.mxu0 0.0
        %428 = vmatpush.msra.mxu0 0.0
        %429 = vmatpush.msra.mxu0 0.0
        %430 = vmatpush.msra.mxu0 0.0
        %431 = vmatpush.msra.mxu0 0.0
        %432 = vmatpush.msra.mxu0 0.0
        %433 = vmatpush.msra.mxu0 0.0
        %434 = vmatpush.msra.mxu0 0.0
        %435 = vmatpush.msra.mxu0 %v359
        %436 = vmatmul.f32.gmra.mxu0 %v418
        %v437 = vpop.f32.mrf.mxu0
        %v438 = vadd.f32 %v395, %v437
        %439 = vdwg.mxu0
        %440 = vmatpush.msra.mxu0 0.0
        %441 = vmatpush.msra.mxu0 0.0
        %442 = vmatpush.msra.mxu0 0.0
        %443 = vmatpush.msra.mxu0 0.0
        %444 = vmatpush.msra.mxu0 0.0
        %445 = vmatpush.msra.mxu0 0.0
        %446 = vmatpush.msra.mxu0 0.0
        %447 = vmatpush.msra.mxu0 0.0
        %448 = vmatpush.msra.mxu0 0.0
        %449 = vmatpush.msra.mxu0 0.0
        %450 = vmatpush.msra.mxu0 0.0
        %451 = vmatpush.msra.mxu0 0.0
        %452 = vmatpush.msra.mxu0 0.0
        %453 = vmatpush.msra.mxu0 0.0
        %454 = vmatpush.msra.mxu0 0.0
        %455 = vmatpush.msra.mxu0 %v360
        %456 = vmatmul.f32.gmra.mxu0 %v418
        %v457 = vpop.f32.mrf.mxu0
        %v458 = vadd.f32 %v415, %v457
        %459 = vdwg.mxu0
        %s460 = scalar_lea.vmem %s291, 16 [#allocation5]
        %v461 = vld [vmem:[%s460] sm:$0xff]
        %v463 = vsel %vm373, %v461, 0
        %465 = vmatpush.msra.mxu0 0.0
        %466 = vmatpush.msra.mxu0 0.0
        %467 = vmatpush.msra.mxu0 0.0
        %468 = vmatpush.msra.mxu0 0.0
        %469 = vmatpush.msra.mxu0 0.0
        %470 = vmatpush.msra.mxu0 0.0
        %471 = vmatpush.msra.mxu0 0.0
        %472 = vmatpush.msra.mxu0 0.0
        %473 = vmatpush.msra.mxu0 0.0
        %474 = vmatpush.msra.mxu0 0.0
        %475 = vmatpush.msra.mxu0 0.0
        %476 = vmatpush.msra.mxu0 0.0
        %477 = vmatpush.msra.mxu0 0.0
        %478 = vmatpush.msra.mxu0 0.0
        %479 = vmatpush.msra.mxu0 0.0
        %480 = vmatpush.msra.mxu0 %v367
        %481 = vmatmul.f32.gmra.mxu0 %v463
        %v482 = vpop.f32.mrf.mxu0
        %v483 = vadd.f32 0.0, %v482
        %484 = vdwg.mxu0
        %485 = vmatpush.msra.mxu0 0.0
        %486 = vmatpush.msra.mxu0 0.0
        %487 = vmatpush.msra.mxu0 0.0
        %488 = vmatpush.msra.mxu0 0.0
        %489 = vmatpush.msra.mxu0 0.0
        %490 = vmatpush.msra.mxu0 0.0
        %491 = vmatpush.msra.mxu0 0.0
        %492 = vmatpush.msra.mxu0 0.0
        %493 = vmatpush.msra.mxu0 0.0
        %494 = vmatpush.msra.mxu0 0.0
        %495 = vmatpush.msra.mxu0 0.0
        %496 = vmatpush.msra.mxu0 0.0
        %497 = vmatpush.msra.mxu0 0.0
        %498 = vmatpush.msra.mxu0 0.0
        %499 = vmatpush.msra.mxu0 0.0
        %500 = vmatpush.msra.mxu0 %v368
        %501 = vmatmul.f32.gmra.mxu0 %v463
        %v502 = vpop.f32.mrf.mxu0
        %v503 = vadd.f32 0.0, %v502
        %504 = vdwg.mxu0
        %v505 = vadd.f32 %v438, %v483
        %v506 = vadd.f32 %v458, %v503
        %508 = vset.pattern.permute.xlu0 0
        %509 = vperm.xlu0 %508, %v369
        %v510 = vpop.permute.xlu0 %509
        %v512 = vadd.f32 %v505, %v510
        %v513 = vadd.f32 %v506, %v510
        %vm514 = vcmask 424960
        %v515 = vsel %vm514, %v513, 0.0
        %v516 = vadd.f32 %v512, %v515
        %517 = vadd.xlane.f32.xlu0 %v516
        %v518 = vpop.xlane.xlu0 %517
        %v519 = vrcp.pop 180.0
        %v520 = vmul.f32 180.0, %v519
        %v521 = vsub.f32 1.0, %v520
        %v522 = vmul.f32 %v519, %v521
        %v523 = vadd.f32 %v519, %v522
        %vm524 = vweird.f32 %v519
        %v525 = vsel %vm524, %v519, %v523
        %v526 = vmul.f32 %v518, %v525
        %v527 = vsub.f32 %v512, %v526
        %v528 = vsub.f32 %v513, %v526
        %v529 = vmul.f32 %v527, %v527
        %v530 = vmul.f32 %v528, %v528
        %v531 = vsel %vm514, %v530, 0.0
        %v532 = vadd.f32 %v529, %v531
        %533 = vadd.xlane.f32.xlu0 %v532
        %v534 = vpop.xlane.xlu0 %533
        %v535 = vmul.f32 %v534, %v525
        %v536 = vadd.f32 %v535, 1e-05
        %v537 = vrsqrt.pop %v536
        %v538 = vmul.f32 %v537, %v536
        %v539 = vmul.f32 %v538, %v537
        %v540 = vmul.f32 0.5, %v539
        %v541 = vsub.f32 1.5, %v540
        %v542 = vmul.f32 %v537, %v541
        %vm543 = vweird.f32 %v536
        %vm544 = vweird.f32 %v537
        %vm545 = vmor %vm543, %vm544
        %v546 = vsel %vm545, %v537, %v542
        %v547 = vmul.f32 %v527, %v546
        %v548 = vmul.f32 %v528, %v546
        %v549 = vld [vmem:[%s343] sm:$0x3]
        %v551 = vperm.slane %v549, 0
        %v552 = vperm.slane %v549, 1
        %v555 = vmul.f32 %v547, %v551
        %v556 = vmul.f32 %v548, %v552
        %v557 = vld [vmem:[%s347] sm:$0x3]
        %v559 = vperm.slane %v557, 0
        %v560 = vperm.slane %v557, 1
        %v563 = vadd.f32 %v555, %v559
        %v564 = vadd.f32 %v556, %v560
        %v565 = vadd.f32 %v357, %v563
        %v566 = vadd.f32 %v358, %v564
        %567 = vst [vmem:[%s335] sm:$0xff] %v565
        %568 = vst.msk [vmem:[%s335 + $0x8] sm:$0xff] %vm514, %v566
        %s569 = sand.u32 %s175, 1
        %s570 = scalar_lea.sflag [#allocation4], %s569
        %s571 = sand.u32 %s175, 1
        %s572 = smul.addr %s571, 16
        %s573 = scalar_lea.vmem [#allocation7], %s572
        // Predicated region
        $region53: #{tpu_custom_call.1} parent=39 // pred_check
          %p574 = pneg %p185
        $region54: #{tpu_custom_call.1} parent=39 // pred_check_branch
          %576 = sbr.rel (%p574) target = $region56
        $region55: #{tpu_custom_call.1} parent=39 // pred_region
          %578 = vsyncadd %s570, 0
          %s579 = smul.addr %s29, 2
          %s580 = smul.addr %s579, 8
          %s581 = scalar_lea.hbm %s5, %s580
          %s583 = sshll.u32 %s573, 4
          %s584 = int_to_ptr.vmem [resolvable:$true] %s583
          %s585 = sshll.u32 %s581, 4
          %s586 = int_to_ptr.hbm [resolvable:$true] %s585
          %588 = dma.vmem_to_hbm [thread:$0]  %s584, 256, %s586, %s570
        $region56: #{tpu_custom_call.1} parent=39 // pred_fallthru
          _
      $region40: #{tpu_custom_call.1} parent=5 // pred_fallthru
        _
      %p589 = scmp.le.s32.totalorder 2, %s20
      // Predicated region
      $region57: #{tpu_custom_call.1} parent=5 // pred_check
        %p590 = pneg %p589
      $region58: #{tpu_custom_call.1} parent=5 // pred_check_branch
        %592 = sbr.rel (%p590) target = $region60
      $region59: #{tpu_custom_call.1} parent=5 // pred_region
        %s593 = ssub.s32 %s20, 2
        // Predicated region
        $region61: #{tpu_custom_call.1} parent=59 // pred_check
          %p594 = pneg %p191
        $region62: #{tpu_custom_call.1} parent=59 // pred_check_branch
          %596 = sbr.rel (%p594) target = $region64
        $region63: #{tpu_custom_call.1} parent=59 // pred_region
          %s597 = sand.u32 %s176, 1
          %s598 = scalar_lea.sflag [#allocation4], %s597
          %s599 = sand.u32 %s176, 1
          %s600 = smul.addr %s599, 16
          %s601 = scalar_lea.vmem [#allocation7], %s600
          %603 = dma.done %s598, 256
        $region64: #{tpu_custom_call.1} parent=59 // pred_fallthru
          _
      $region60: #{tpu_custom_call.1} parent=5 // pred_fallthru
        _
    $region6: #{tpu_custom_call.1} parent=1 // loop_footer
      %s24 = sadd.s32 1, %s20
    $region7: #{tpu_custom_call.1} parent=1 // loop_footer_branch
      %19 = sbr.rel target = $region3
    $region8: #{tpu_custom_call.1} parent=1 // loop_exit
      _
    %604 = vsyncpa [#allocation3], 1
    %s605 = scalar_lea.sflag [#allocation3], 1
    %606 = vsyncpa %s605, 1
    %607 = vsyncpa [#allocation6], 1
    %s608 = scalar_lea.sflag [#allocation6], 1
    %609 = vsyncpa %s608, 1
    %610 = vsyncpa [#allocation4], 1
    %s611 = scalar_lea.sflag [#allocation4], 1
    %612 = vsyncpa %s611, 1

</llo_original>
